<compile_context>
chip_gen: v6e
topology: v6e:2x2x1
jax: 0.10.0
libtpu: 0.0.40
codegen_flags: <defaults>
</compile_context>

<pallas_src>
import functools

import jax
import jax.numpy as jnp
from jax.experimental import pallas as pl
from jax.experimental.pallas import tpu as pltpu


def _round_up(v, m):
    return (v + m - 1) // m * m


def _label_smoothing_kernel(x_ref, tgt_ref, out_ref, acc_ref, *,
                            confidence, smoothing, n_true, c_true):
    i = pl.program_id(0)

    @pl.when(i == 0)
    def _init():
        acc_ref[...] = jnp.zeros_like(acc_ref)

    x = x_ref[...].astype(jnp.float32)              # [TM, Cp]
    tgt = tgt_ref[...]                              # [TM, 1] int32
    tm, cp = x.shape

    col_ids = jax.lax.broadcasted_iota(jnp.int32, (tm, cp), 1)
    col_valid = col_ids < c_true                    # mask out padded classes

    # Row max on the XLU. Padded columns hold 0, which can only raise m, so the
    # shift stays numerically stable and lse is unchanged once they are masked.
    m = jnp.max(x, axis=-1, keepdims=True)                          # [TM, 1]
    e = jnp.where(col_valid, jnp.exp(x - m), 0.0)                   # [TM, Cp]

    # Row reductions on the MXU (dot with a ones column); padded columns of x
    # are zero so s_x and x_tgt need no extra masking.
    ones_c = jnp.ones((cp, 1), dtype=jnp.float32)
    s_exp = jnp.dot(e, ones_c, preferred_element_type=jnp.float32)  # [TM, 1]
    s_x = jnp.dot(x, ones_c, preferred_element_type=jnp.float32)    # [TM, 1]
    x_tgt = jnp.dot(jnp.where(col_ids == tgt, x, 0.0), ones_c,
                    preferred_element_type=jnp.float32)             # [TM, 1]

    # loss_i = (m + lse) - confidence * x[i, t_i] - smoothing * mean_C(x[i, :])
    loss = (m + jnp.log(s_exp)) \
        - confidence * x_tgt \
        - (smoothing / float(c_true)) * s_x                          # [TM, 1]

    # Mask rows that come from padding the batch up to a multiple of TM.
    row_ids = i * tm + jax.lax.broadcasted_iota(jnp.int32, (tm, 1), 0)
    loss = jnp.where(row_ids < n_true, loss, 0.0)

    acc_ref[...] += jnp.sum(loss).reshape(1, 1)

    @pl.when(i == pl.num_programs(0) - 1)
    def _finalize():
        out_ref[...] = acc_ref[...] * (1.0 / float(n_true))


def label_smoothing_loss(x, target, smoothing=0.1):
    """x: [N, C] float logits, target: [N] int class indices -> scalar f32 loss."""
    confidence = 1.0 - smoothing
    n, c = x.shape

    # Lane-dense class dim, (8,128)-aligned blocks.
    c_pad = _round_up(c, 128)

    # Row tile: ~4 MiB of x per block (Pallas double-buffers it), multiple of 8,
    # capped at 1024 rows. Safe on v7x's 64 MiB VMEM; plenty of headroom on
    # v5e/v6e (128 MiB).
    itemsize = jnp.dtype(x.dtype).itemsize
    tm = (4 * 1024 * 1024) // max(1, c_pad * itemsize)
    tm = max(8, min(1024, (tm // 8) * 8))
    tm = min(tm, _round_up(n, 8))
    n_pad = _round_up(n, tm)

    if (n_pad != n) or (c_pad != c):
        x = jnp.pad(x, ((0, n_pad - n), (0, c_pad - c)))
    tgt2d = target.astype(jnp.int32)
    if n_pad != n:
        tgt2d = jnp.pad(tgt2d, ((0, n_pad - n),))
    tgt2d = tgt2d.reshape(n_pad, 1)

    kernel = functools.partial(
        _label_smoothing_kernel,
        confidence=float(confidence),
        smoothing=float(smoothing),
        n_true=n,
        c_true=c,
    )

    out = pl.pallas_call(
        kernel,
        out_shape=jax.ShapeDtypeStruct((1, 1), jnp.float32),
        grid=(n_pad // tm,),
        in_specs=[
            pl.BlockSpec((tm, c_pad), lambda i: (i, 0)),
            pl.BlockSpec((tm, 1), lambda i: (i, 0)),
        ],
        out_specs=pl.BlockSpec((1, 1), lambda i: (0, 0)),
        scratch_shapes=[pltpu.VMEM((1, 1), jnp.float32)],
        compiler_params=pltpu.CompilerParams(
            dimension_semantics=("arbitrary",),
            vmem_limit_bytes=64 * 1024 * 1024,
        ),
    )(x, tgt2d)
    return out[0, 0]


def _reference(x, target, smoothing=0.1):
    confidence = 1.0 - smoothing
    logprobs = jax.nn.log_softmax(x.astype(jnp.float32), axis=-1)
    nll = -jnp.take_along_axis(logprobs, target[:, None], axis=-1)[:, 0]
    smooth = -jnp.mean(logprobs, axis=-1)
    return jnp.mean(confidence * nll + smoothing * smooth)


if __name__ == "__main__":
    key = jax.random.PRNGKey(0)
    smoothing = 0.1

    # Primary toy case (seq=8, classes=32).
    kx, kt = jax.random.split(key)
    N, C = 8, 32
    x = jax.random.normal(kx, (N, C), dtype=jnp.float32)
    target = jax.random.randint(kt, (N,), 0, C, dtype=jnp.int32)

    loss = label_smoothing_loss(x, target, smoothing=smoothing)
    loss = jax.block_until_ready(loss)
    ref = _reference(x, target, smoothing=smoothing)
    assert jnp.allclose(loss, ref, atol=1e-5, rtol=1e-5), (loss, ref)

    # Ragged case to exercise row/column padding + masking.
    kx2, kt2 = jax.random.split(jax.random.PRNGKey(1))
    N2, C2 = 13, 50
    x2 = jax.random.normal(kx2, (N2, C2), dtype=jnp.float32)
    target2 = jax.random.randint(kt2, (N2,), 0, C2, dtype=jnp.int32)

    loss2 = label_smoothing_loss(x2, target2, smoothing=smoothing)
    loss2 = jax.block_until_ready(loss2)
    ref2 = _reference(x2, target2, smoothing=smoothing)
    assert jnp.allclose(loss2, ref2, atol=1e-5, rtol=1e-5), (loss2, ref2)

    print("KERNEL_OK")
</pallas_src>

<mosaic_0001>
module attributes {stable_mosaic.version = 11 : i64} {
  func.func @_label_smoothing_kernel(%arg0: i32, %arg1: memref<8x128xf32, #tpu.memory_space<vmem>>, %arg2: memref<8x1xi32, #tpu.memory_space<vmem>>, %arg3: memref<1x1xf32, #tpu.memory_space<vmem>>, %arg4: memref<1x1xf32, #tpu.memory_space<vmem>>) attributes {dimension_semantics = [#tpu.dimension_semantics<arbitrary>], iteration_bounds = array<i64: 1>, scalar_prefetch = 0 : i64, scratch_operands = 1 : i64, tpu.core_type = #tpu.core_type<tc>, window_params = [{transform_indices = @transform_0, window_bounds = array<i64: 8, 128>}, {transform_indices = @transform_1, window_bounds = array<i64: 8, 1>}, {pipeline_mode = #tpu.pipeline_mode<synchronous>, transform_indices = @transform_2, window_bounds = array<i64: 1, 1>}]} {
    %c0_i32 = arith.constant 0 : i32
    %0 = arith.cmpi eq, %arg0, %c0_i32 : i32
    %1 = arith.extui %0 : i1 to i32
    %c0_i32_0 = arith.constant 0 : i32
    %2 = arith.cmpi ne, %1, %c0_i32_0 : i32
    scf.if %2 {
      %cst_21 = arith.constant 0.000000e+00 : f32
      %50 = vector.broadcast %cst_21 : f32 to vector<1x1xf32>
      %c0_22 = arith.constant 0 : index
      %c0_23 = arith.constant 0 : index
      %51 = vector.load %arg4[%c0_22, %c0_23] : memref<1x1xf32, #tpu.memory_space<vmem>>, vector<1x1xf32>
      tpu.vector_store %arg4[%c0_22, %c0_23], %50 {strides = array<i32>} : memref<1x1xf32, #tpu.memory_space<vmem>>, vector<1x1xf32>,
    } else {
    }
    %c0 = arith.constant 0 : index
    %c0_1 = arith.constant 0 : index
    %3 = vector.load %arg1[%c0, %c0_1] : memref<8x128xf32, #tpu.memory_space<vmem>>, vector<8x128xf32>
    %c0_2 = arith.constant 0 : index
    %c0_3 = arith.constant 0 : index
    %4 = vector.load %arg2[%c0_2, %c0_3] : memref<8x1xi32, #tpu.memory_space<vmem>>, vector<8x1xi32>
    %5 = tpu.iota {dimensions = array<i32: 1>} : vector<8x128xi32>
    %c32_i32 = arith.constant 32 : i32
    %6 = vector.broadcast %c32_i32 : i32 to vector<8x128xi32>
    %7 = arith.cmpi slt, %5, %6 : vector<8x128xi32>
    %cst = arith.constant dense<0xFF800000> : vector<8xf32>
    %8 = vector.multi_reduction <maximumf>, %3, %cst [1] : vector<8x128xf32> to vector<8xf32>
    %9 = vector.shape_cast %8 : vector<8xf32> to vector<8x1xf32>
    %10 = vector.broadcast %9 : vector<8x1xf32> to vector<8x128xf32>
    %11 = arith.subf %3, %10 : vector<8x128xf32>
    %12 = math.exp %11 : vector<8x128xf32>
    %cst_4 = arith.constant 0.000000e+00 : f32
    %13 = vector.broadcast %cst_4 : f32 to vector<8x128xf32>
    %14 = arith.select %7, %12, %13 : vector<8x128xi1>, vector<8x128xf32>
    %cst_5 = arith.constant 1.000000e+00 : f32
    %15 = vector.broadcast %cst_5 : f32 to vector<128x1xf32>
    %cst_6 = arith.constant dense<0.000000e+00> : vector<8x1xf32>
    %16 = tpu.matmul %14, %15, %cst_6 {dimension_numbers = #tpu.dot_dimension_numbers<[1], [0], [0], [1], [0, 0, 1, 1], [], []>} : vector<8x128xf32>, vector<128x1xf32>, vector<8x1xf32> -> vector<8x1xf32>
    %cst_7 = arith.constant dense<0.000000e+00> : vector<8x1xf32>
    %17 = tpu.matmul %3, %15, %cst_7 {dimension_numbers = #tpu.dot_dimension_numbers<[1], [0], [0], [1], [0, 0, 1, 1], [], []>} : vector<8x128xf32>, vector<128x1xf32>, vector<8x1xf32> -> vector<8x1xf32>
    %18 = vector.broadcast %4 : vector<8x1xi32> to vector<8x128xi32>
    %19 = arith.cmpi eq, %5, %18 : vector<8x128xi32>
    %cst_8 = arith.constant 0.000000e+00 : f32
    %20 = vector.broadcast %cst_8 : f32 to vector<8x128xf32>
    %21 = arith.select %19, %3, %20 : vector<8x128xi1>, vector<8x128xf32>
    %cst_9 = arith.constant dense<0.000000e+00> : vector<8x1xf32>
    %22 = tpu.matmul %21, %15, %cst_9 {dimension_numbers = #tpu.dot_dimension_numbers<[1], [0], [0], [1], [0, 0, 1, 1], [], []>} : vector<8x128xf32>, vector<128x1xf32>, vector<8x1xf32> -> vector<8x1xf32>
    %23 = math.log %16 : vector<8x1xf32>
    %24 = arith.addf %9, %23 : vector<8x1xf32>
    %cst_10 = arith.constant 0.899999976 : f32
    %25 = vector.broadcast %cst_10 : f32 to vector<8x1xf32>
    %26 = arith.mulf %25, %22 : vector<8x1xf32>
    %27 = arith.subf %24, %26 : vector<8x1xf32>
    %cst_11 = arith.constant 3.125000e-03 : f32
    %28 = vector.broadcast %cst_11 : f32 to vector<8x1xf32>
    %29 = arith.mulf %28, %17 : vector<8x1xf32>
    %30 = arith.subf %27, %29 : vector<8x1xf32>
    %c8_i32 = arith.constant 8 : i32
    %31 = arith.muli %arg0, %c8_i32 : i32
    %32 = tpu.iota {dimensions = array<i32: 0>} : vector<8x1xi32>
    %33 = vector.broadcast %31 : i32 to vector<8x1xi32>
    %34 = arith.addi %33, %32 : vector<8x1xi32>
    %c8_i32_12 = arith.constant 8 : i32
    %35 = vector.broadcast %c8_i32_12 : i32 to vector<8x1xi32>
    %36 = arith.cmpi slt, %34, %35 : vector<8x1xi32>
    %cst_13 = arith.constant 0.000000e+00 : f32
    %37 = vector.broadcast %cst_13 : f32 to vector<8x1xf32>
    %38 = arith.select %36, %30, %37 : vector<8x1xi1>, vector<8x1xf32>
    %c0_14 = arith.constant 0 : index
    %c0_15 = arith.constant 0 : index
    %39 = vector.load %arg4[%c0_14, %c0_15] : memref<1x1xf32, #tpu.memory_space<vmem>>, vector<1x1xf32>
    %40 = vector.shape_cast %38 : vector<8x1xf32> to vector<1x8x1xf32>
    %cst_16 = arith.constant dense<0.000000e+00> : vector<1xf32>
    %41 = vector.multi_reduction <add>, %40, %cst_16 [1, 2] : vector<1x8x1xf32> to vector<1xf32>
    %42 = vector.shape_cast %41 : vector<1xf32> to vector<1x1x1xf32>
    %43 = vector.extract %42[0, 0, 0] : f32 from vector<1x1x1xf32>
    %44 = vector.broadcast %43 : f32 to vector<1x1xf32>
    %45 = arith.addf %39, %44 : vector<1x1xf32>
    %c0_17 = arith.constant 0 : index
    %c0_18 = arith.constant 0 : index
    %46 = vector.load %arg4[%c0_17, %c0_18] : memref<1x1xf32, #tpu.memory_space<vmem>>, vector<1x1xf32>
    tpu.vector_store %arg4[%c0_17, %c0_18], %45 {strides = array<i32>} : memref<1x1xf32, #tpu.memory_space<vmem>>, vector<1x1xf32>,
    %c0_i32_19 = arith.constant 0 : i32
    %47 = arith.cmpi eq, %arg0, %c0_i32_19 : i32
    %48 = arith.extui %47 : i1 to i32
    %c0_i32_20 = arith.constant 0 : i32
    %49 = arith.cmpi ne, %48, %c0_i32_20 : i32
    scf.if %49 {
      %c0_21 = arith.constant 0 : index
      %c0_22 = arith.constant 0 : index
      %50 = vector.load %arg4[%c0_21, %c0_22] : memref<1x1xf32, #tpu.memory_space<vmem>>, vector<1x1xf32>
      %cst_23 = arith.constant 1.250000e-01 : f32
      %51 = vector.broadcast %cst_23 : f32 to vector<1x1xf32>
      %52 = arith.mulf %50, %51 : vector<1x1xf32>
      %c0_24 = arith.constant 0 : index
      %c0_25 = arith.constant 0 : index
      %53 = vector.load %arg3[%c0_24, %c0_25] : memref<1x1xf32, #tpu.memory_space<vmem>>, vector<1x1xf32>
      tpu.vector_store %arg3[%c0_24, %c0_25], %52 {strides = array<i32>} : memref<1x1xf32, #tpu.memory_space<vmem>>, vector<1x1xf32>,
    } else {
    }
    return
  }
  func.func @transform_0(%arg0: i32) -> (i32, i32) {
    %c0_i32 = arith.constant 0 : i32
    %c0_i32_0 = arith.constant 0 : i32
    return %arg0, %c0_i32 : i32, i32
  }
  func.func @transform_1(%arg0: i32) -> (i32, i32) {
    %c0_i32 = arith.constant 0 : i32
    %c0_i32_0 = arith.constant 0 : i32
    return %arg0, %c0_i32 : i32, i32
  }
  func.func @transform_2(%arg0: i32) -> (i32, i32) {
    %c0_i32 = arith.constant 0 : i32
    %c0_i32_0 = arith.constant 0 : i32
    %c0_i32_1 = arith.constant 0 : i32
    return %c0_i32, %c0_i32_0 : i32, i32
  }
}

</mosaic_0001>

<llo_original>
// kernel: tpu_custom_call.1
$region0: #{tpu_custom_call.1}
  #allocation0 [shape = 'u32[]', space=smem, size = 0x4, offset = 0x4, fixed_abs, tag = 'smem constant byte address 0x4 - core index']
  #allocation1 [shape = 'u32[144,128]{1,0:T(1,128)}', space=vmem, size = 0x12000, scoped, tag = 'internal scratch']
  #allocation2 [shape = 'f32[1,1]{1,0:T(1,128)}', space=vmem, size = 0x200, scoped, tag = 'scratch operand']
  %s0 = inlined_call_operand.vmem [shape: f32[8,128], index: 0, kind: input, shape index: {}]
  %s1 = inlined_call_operand.vmem [shape: s32[8,1], index: 1, kind: input, shape index: {}]
  %s2 = inlined_call_operand.hbm [shape: f32[1,1], index: 2, kind: output, shape index: {}]
  %s3 = sld [smem:[#allocation0]]
  $region26: #{tpu_custom_call.1} parent=0
    _
  %s5 = ssub.s32 1, %s3
  %s6 = scalar_select 0, %s5, %s3
  $region1: #{tpu_custom_call.1} parent=0
    #allocation3 [shape = 'u8[512]{0}', space=vmem, size = 0x400, scoped, tag = 'output window, operand 0, single buffered']
    #allocation4 [shape = 's32[1]{0}', space=sflag, size = 0x4, scoped, tag = 'scoped memory for tpu_custom_call.1']
    %7 = vsyncpa [#allocation4], 0
    // Predicated region
    $region2: #{tpu_custom_call.1} parent=1 // pred_check
      _
    $region3: #{tpu_custom_call.1} parent=1 // pred_check_branch
      %9 = sbr.rel (0) target = $region5
    $region4: #{tpu_custom_call.1} parent=1 // pred_region
      _
    $region5: #{tpu_custom_call.1} parent=1 // pred_fallthru
      _
    // Predicated region
    $region6: #{tpu_custom_call.1} parent=1 // pred_check
      _
    $region7: #{tpu_custom_call.1} parent=1 // pred_check_branch
      %11 = sbr.rel (0) target = $region9
    $region8: #{tpu_custom_call.1} parent=1 // pred_region
      _
    $region9: #{tpu_custom_call.1} parent=1 // pred_fallthru
      _
    %p12 = scmp.eq.s32.totalorder 0, 0
    // Predicated region
    $region10: #{tpu_custom_call.1} parent=1 // pred_check
      %p13 = pneg %p12
    $region11: #{tpu_custom_call.1} parent=1 // pred_check_branch
      %15 = sbr.rel (%p13) target = $region13
    $region12: #{tpu_custom_call.1} parent=1 // pred_region
      %vm16 = vcmask 0
      %17 = vst.msk [vmem:[#allocation2] sm:$0x1] %vm16, 0.0
    $region13: #{tpu_custom_call.1} parent=1 // pred_fallthru
      _
    %v18 = vld [vmem:[%s0] sm:$0xff]
    %v19 = vld [vmem:[%s1] sm:$0xff]
    %v20 = vlaneseq
    %v21 = vand.u32 %v20, 127
    %vm22 = vcmp.lt.s32.totalorder %v21, 32
    %23 = vmax.xlane.f32.xlu0 %v18
    %v24 = vpop.xlane.xlu0 %23
    %v25 = vsub.f32 %v18, %v24
    %v26 = vmul.f32 %v25, 1.442695
    %v27 = vpow.pop %v26
    %v28 = vsel %vm22, %v27, 0.0
    %29 = vmatprep.subr.mxu0 0.0
    %30 = vmatpush1.msra.mxu0 1.0
    %31 = vmatprep.subr.mxu0 0.0
    %32 = vmatpush1.msra.mxu0 1.0
    %33 = vmatprep.subr.mxu0 0.0
    %34 = vmatpush1.msra.mxu0 1.0
    %35 = vmatprep.subr.mxu0 0.0
    %36 = vmatpush1.msra.mxu0 1.0
    %37 = vmatprep.subr.mxu0 0.0
    %38 = vmatpush1.msra.mxu0 1.0
    %39 = vmatprep.subr.mxu0 0.0
    %40 = vmatpush1.msra.mxu0 1.0
    %41 = vmatprep.subr.mxu0 0.0
    %42 = vmatpush1.msra.mxu0 1.0
    %43 = vmatprep.subr.mxu0 0.0
    %44 = vmatpush1.msra.mxu0 1.0
    %45 = vmatprep.subr.mxu0 0.0
    %46 = vmatpush1.msra.mxu0 1.0
    %47 = vmatprep.subr.mxu0 0.0
    %48 = vmatpush1.msra.mxu0 1.0
    %49 = vmatprep.subr.mxu0 0.0
    %50 = vmatpush1.msra.mxu0 1.0
    %51 = vmatprep.subr.mxu0 0.0
    %52 = vmatpush1.msra.mxu0 1.0
    %53 = vmatprep.subr.mxu0 0.0
    %54 = vmatpush1.msra.mxu0 1.0
    %55 = vmatprep.subr.mxu0 0.0
    %56 = vmatpush1.msra.mxu0 1.0
    %57 = vmatprep.subr.mxu0 0.0
    %58 = vmatpush1.msra.mxu0 1.0
    %59 = vmatprep.subr.mxu0 0.0
    %60 = vmatpush1.msra.mxu0 1.0
    %61 = vmatprep.subr.mxu0 0.0
    %62 = vmatpush2.msra.mxu0 0.0
    %63 = vmatprep.subr.mxu0 0.0
    %64 = vmatpush2.msra.mxu0 0.0
    %65 = vmatprep.subr.mxu0 0.0
    %66 = vmatpush2.msra.mxu0 0.0
    %67 = vmatprep.subr.mxu0 0.0
    %68 = vmatpush2.msra.mxu0 0.0
    %69 = vmatprep.subr.mxu0 0.0
    %70 = vmatpush2.msra.mxu0 0.0
    %71 = vmatprep.subr.mxu0 0.0
    %72 = vmatpush2.msra.mxu0 0.0
    %73 = vmatprep.subr.mxu0 0.0
    %74 = vmatpush2.msra.mxu0 0.0
    %75 = vmatprep.subr.mxu0 0.0
    %76 = vmatpush2.msra.mxu0 0.0
    %77 = vmatprep.subr.mxu0 0.0
    %78 = vmatpush2.msra.mxu0 0.0
    %79 = vmatprep.subr.mxu0 0.0
    %80 = vmatpush2.msra.mxu0 0.0
    %81 = vmatprep.subr.mxu0 0.0
    %82 = vmatpush2.msra.mxu0 0.0
    %83 = vmatprep.subr.mxu0 0.0
    %84 = vmatpush2.msra.mxu0 0.0
    %85 = vmatprep.subr.mxu0 0.0
    %86 = vmatpush2.msra.mxu0 0.0
    %87 = vmatprep.subr.mxu0 0.0
    %88 = vmatpush2.msra.mxu0 0.0
    %89 = vmatprep.subr.mxu0 0.0
    %90 = vmatpush2.msra.mxu0 0.0
    %91 = vmatprep.subr.mxu0 0.0
    %92 = vmatpush2.msra.mxu0 0.0
    %93 = vmatprep.mubr.f32.mxu0 0.0
    %94 = vmatmul.mubr.f32.gmra.mxu0 %v28
    %v95 = vpop.f32.mrf.mxu0
    %v96 = vadd.f32 0.0, %v95
    %v97 = vpop.f32.mrf.mxu0
    %98 = vdwg.mxu0
    %99 = vmatprep.subr.mxu0 0.0
    %100 = vmatpush1.msra.mxu0 1.0
    %101 = vmatprep.subr.mxu0 0.0
    %102 = vmatpush1.msra.mxu0 1.0
    %103 = vmatprep.subr.mxu0 0.0
    %104 = vmatpush1.msra.mxu0 1.0
    %105 = vmatprep.subr.mxu0 0.0
    %106 = vmatpush1.msra.mxu0 1.0
    %107 = vmatprep.subr.mxu0 0.0
    %108 = vmatpush1.msra.mxu0 1.0
    %109 = vmatprep.subr.mxu0 0.0
    %110 = vmatpush1.msra.mxu0 1.0
    %111 = vmatprep.subr.mxu0 0.0
    %112 = vmatpush1.msra.mxu0 1.0
    %113 = vmatprep.subr.mxu0 0.0
    %114 = vmatpush1.msra.mxu0 1.0
    %115 = vmatprep.subr.mxu0 0.0
    %116 = vmatpush1.msra.mxu0 1.0
    %117 = vmatprep.subr.mxu0 0.0
    %118 = vmatpush1.msra.mxu0 1.0
    %119 = vmatprep.subr.mxu0 0.0
    %120 = vmatpush1.msra.mxu0 1.0
    %121 = vmatprep.subr.mxu0 0.0
    %122 = vmatpush1.msra.mxu0 1.0
    %123 = vmatprep.subr.mxu0 0.0
    %124 = vmatpush1.msra.mxu0 1.0
    %125 = vmatprep.subr.mxu0 0.0
    %126 = vmatpush1.msra.mxu0 1.0
    %127 = vmatprep.subr.mxu0 0.0
    %128 = vmatpush1.msra.mxu0 1.0
    %129 = vmatprep.subr.mxu0 0.0
    %130 = vmatpush1.msra.mxu0 1.0
    %131 = vmatprep.subr.mxu0 0.0
    %132 = vmatpush2.msra.mxu0 0.0
    %133 = vmatprep.subr.mxu0 0.0
    %134 = vmatpush2.msra.mxu0 0.0
    %135 = vmatprep.subr.mxu0 0.0
    %136 = vmatpush2.msra.mxu0 0.0
    %137 = vmatprep.subr.mxu0 0.0
    %138 = vmatpush2.msra.mxu0 0.0
    %139 = vmatprep.subr.mxu0 0.0
    %140 = vmatpush2.msra.mxu0 0.0
    %141 = vmatprep.subr.mxu0 0.0
    %142 = vmatpush2.msra.mxu0 0.0
    %143 = vmatprep.subr.mxu0 0.0
    %144 = vmatpush2.msra.mxu0 0.0
    %145 = vmatprep.subr.mxu0 0.0
    %146 = vmatpush2.msra.mxu0 0.0
    %147 = vmatprep.subr.mxu0 0.0
    %148 = vmatpush2.msra.mxu0 0.0
    %149 = vmatprep.subr.mxu0 0.0
    %150 = vmatpush2.msra.mxu0 0.0
    %151 = vmatprep.subr.mxu0 0.0
    %152 = vmatpush2.msra.mxu0 0.0
    %153 = vmatprep.subr.mxu0 0.0
    %154 = vmatpush2.msra.mxu0 0.0
    %155 = vmatprep.subr.mxu0 0.0
    %156 = vmatpush2.msra.mxu0 0.0
    %157 = vmatprep.subr.mxu0 0.0
    %158 = vmatpush2.msra.mxu0 0.0
    %159 = vmatprep.subr.mxu0 0.0
    %160 = vmatpush2.msra.mxu0 0.0
    %161 = vmatprep.subr.mxu0 0.0
    %162 = vmatpush2.msra.mxu0 0.0
    %163 = vmatprep.mubr.f32.mxu0 0.0
    %164 = vmatmul.mubr.f32.gmra.mxu0 %v18
    %v165 = vpop.f32.mrf.mxu0
    %v166 = vadd.f32 0.0, %v165
    %v167 = vpop.f32.mrf.mxu0
    %168 = vdwg.mxu0
    %169 = vset.pattern.permute.xlu0 0
    %170 = vperm.xlu0 %169, %v19
    %v171 = vpop.permute.xlu0 %170
    %vm172 = vcmp.eq.s32.totalorder %v21, %v171
    %v173 = vsel %vm172, %v18, 0.0
    %174 = vmatprep.subr.mxu0 0.0
    %175 = vmatpush1.msra.mxu0 1.0
    %176 = vmatprep.subr.mxu0 0.0
    %177 = vmatpush1.msra.mxu0 1.0
    %178 = vmatprep.subr.mxu0 0.0
    %179 = vmatpush1.msra.mxu0 1.0
    %180 = vmatprep.subr.mxu0 0.0
    %181 = vmatpush1.msra.mxu0 1.0
    %182 = vmatprep.subr.mxu0 0.0
    %183 = vmatpush1.msra.mxu0 1.0
    %184 = vmatprep.subr.mxu0 0.0
    %185 = vmatpush1.msra.mxu0 1.0
    %186 = vmatprep.subr.mxu0 0.0
    %187 = vmatpush1.msra.mxu0 1.0
    %188 = vmatprep.subr.mxu0 0.0
    %189 = vmatpush1.msra.mxu0 1.0
    %190 = vmatprep.subr.mxu0 0.0
    %191 = vmatpush1.msra.mxu0 1.0
    %192 = vmatprep.subr.mxu0 0.0
    %193 = vmatpush1.msra.mxu0 1.0
    %194 = vmatprep.subr.mxu0 0.0
    %195 = vmatpush1.msra.mxu0 1.0
    %196 = vmatprep.subr.mxu0 0.0
    %197 = vmatpush1.msra.mxu0 1.0
    %198 = vmatprep.subr.mxu0 0.0
    %199 = vmatpush1.msra.mxu0 1.0
    %200 = vmatprep.subr.mxu0 0.0
    %201 = vmatpush1.msra.mxu0 1.0
    %202 = vmatprep.subr.mxu0 0.0
    %203 = vmatpush1.msra.mxu0 1.0
    %204 = vmatprep.subr.mxu0 0.0
    %205 = vmatpush1.msra.mxu0 1.0
    %206 = vmatprep.subr.mxu0 0.0
    %207 = vmatpush2.msra.mxu0 0.0
    %208 = vmatprep.subr.mxu0 0.0
    %209 = vmatpush2.msra.mxu0 0.0
    %210 = vmatprep.subr.mxu0 0.0
    %211 = vmatpush2.msra.mxu0 0.0
    %212 = vmatprep.subr.mxu0 0.0
    %213 = vmatpush2.msra.mxu0 0.0
    %214 = vmatprep.subr.mxu0 0.0
    %215 = vmatpush2.msra.mxu0 0.0
    %216 = vmatprep.subr.mxu0 0.0
    %217 = vmatpush2.msra.mxu0 0.0
    %218 = vmatprep.subr.mxu0 0.0
    %219 = vmatpush2.msra.mxu0 0.0
    %220 = vmatprep.subr.mxu0 0.0
    %221 = vmatpush2.msra.mxu0 0.0
    %222 = vmatprep.subr.mxu0 0.0
    %223 = vmatpush2.msra.mxu0 0.0
    %224 = vmatprep.subr.mxu0 0.0
    %225 = vmatpush2.msra.mxu0 0.0
    %226 = vmatprep.subr.mxu0 0.0
    %227 = vmatpush2.msra.mxu0 0.0
    %228 = vmatprep.subr.mxu0 0.0
    %229 = vmatpush2.msra.mxu0 0.0
    %230 = vmatprep.subr.mxu0 0.0
    %231 = vmatpush2.msra.mxu0 0.0
    %232 = vmatprep.subr.mxu0 0.0
    %233 = vmatpush2.msra.mxu0 0.0
    %234 = vmatprep.subr.mxu0 0.0
    %235 = vmatpush2.msra.mxu0 0.0
    %236 = vmatprep.subr.mxu0 0.0
    %237 = vmatpush2.msra.mxu0 0.0
    %238 = vmatprep.mubr.f32.mxu0 0.0
    %239 = vmatmul.mubr.f32.gmra.mxu0 %v173
    %v240 = vpop.f32.mrf.mxu0
    %v241 = vadd.f32 0.0, %v240
    %v242 = vpop.f32.mrf.mxu0
    %243 = vdwg.mxu0
    %v244 = vlog2.pop %v96
    %v245 = vmul.f32 %v244, 0.6931472
    %v246 = vadd.f32 %v24, %v245
    %v247 = vmul.f32 %v241, 0.9
    %v248 = vsub.f32 %v246, %v247
    %v249 = vmul.f32 %v166, 0.003125
    %v250 = vsub.f32 %v248, %v249
    %s251 = smul.u32 0, 8
    %v252 = vlaneseq
    %v253 = vshrl.u32 %v252, 7
    %v254 = vstv %s251
    %v255 = vadd.s32 %v254, %v253
    %vm256 = vcmp.lt.s32.totalorder %v255, 8
    %v257 = vsel %vm256, %v250, 0.0
    %v258 = vld [vmem:[#allocation2] sm:$0x1]
    %vm259 = vcmask 7168
    %v260 = vsel %vm259, %v257, 0.0
    %261 = vadd.xlane.f32.xlu0 %v260
    %v262 = vpop.xlane.xlu0 %261
    %v263 = vrot.slane %v262, 4
    %v264 = vadd.f32 %v262, %v263
    %v265 = vrot.slane %v264, 2
    %v266 = vadd.f32 %v264, %v265
    %v267 = vrot.slane %v266, 1
    %v268 = vadd.f32 %v266, %v267
    %s269 = vtos %v268
    %v270 = vstv %s269
    %v271 = vadd.f32 %v258, %v270
    %vm272 = vcmask 0
    %273 = vst.msk [vmem:[#allocation2] sm:$0x1] %vm272, %v271
    // Predicated region
    $region14: #{tpu_custom_call.1} parent=1 // pred_check
      %p274 = pneg %p12
    $region15: #{tpu_custom_call.1} parent=1 // pred_check_branch
      %276 = sbr.rel (%p274) target = $region17
    $region16: #{tpu_custom_call.1} parent=1 // pred_region
      %v277 = vld [vmem:[#allocation2] sm:$0x1]
      %v278 = vmul.f32 %v277, 0.125
      %279 = vst.msk [vmem:[#allocation3] sm:$0x1] %vm272, %v278
    $region17: #{tpu_custom_call.1} parent=1 // pred_fallthru
      _
    // Predicated region
    $region18: #{tpu_custom_call.1} parent=1 // pred_check
      _
    $region19: #{tpu_custom_call.1} parent=1 // pred_check_branch
      %281 = sbr.rel (0) target = $region21
    $region20: #{tpu_custom_call.1} parent=1 // pred_region
      %s283 = ssub.s32 16, 16
      %284 = vsyncadd [#allocation4], %s283
      %s286 = sshll.u32 [#allocation3], 4
      %s287 = int_to_ptr.vmem [resolvable:$true] %s286
      %289 = dma.vmem_to_hbm [thread:$0]  %s287, 16, %s2, [#allocation4]
    $region21: #{tpu_custom_call.1} parent=1 // pred_fallthru
      _
    // Predicated region
    $region22: #{tpu_custom_call.1} parent=1 // pred_check
      _
    $region23: #{tpu_custom_call.1} parent=1 // pred_check_branch
      %291 = sbr.rel (0) target = $region25
    $region24: #{tpu_custom_call.1} parent=1 // pred_region
      %292 = dma.done [#allocation4], 16
    $region25: #{tpu_custom_call.1} parent=1 // pred_fallthru
      _
    %293 = vsyncpa [#allocation4], 1

</llo_original>
